<compile_context>
chip_gen: v6e
topology: v6e:2x2x1
jax: 0.10.0
libtpu: 0.0.40
codegen_flags: <defaults>
</compile_context>

<pallas_src>
import jax
import jax.numpy as jnp
from jax.experimental import pallas as pl
from jax.experimental.pallas import tpu as pltpu

EPS = 1e-8
LANE = 128


def _round_up(n, m):
    return ((n + m - 1) // m) * m


# --------------------------------- wrapper -----------------------------------

def res_block(x, c, params):
    """Pallas implementation of ResBlock.forward((x, c)) -> (out, c)."""
    B, Cin, L = x.shape
    Cout = params["conv2_w"].shape[0]          # torch Conv1d weight: (out, in, k)
    has_skip_conv = "convs_w" in params        # nn.Identity() when in_ch == out_ch
    L_pad = max(_round_up(L, LANE), LANE)

    f32, bf16 = jnp.float32, jnp.bfloat16

    # ---- hoisted AdaIN style projections: per-sample (C, 1) scale / bias ----
    c32 = c.astype(f32)

    def style_col(w, b):                       # nn.Linear(style): (B, Cc)@(Cc, C)+b
        return (c32 @ w.astype(f32).T + b.astype(f32))[:, :, None]   # (B, C, 1)

    n1_scale = style_col(params["n1_scale_w"], params["n1_scale_b"])
    n1_bias = style_col(params["n1_bias_w"], params["n1_bias_b"])
    n2_scale = style_col(params["n2_scale_w"], params["n2_scale_b"])
    n2_bias = style_col(params["n2_bias_w"], params["n2_bias_b"])

    # ---- conv weights: (O, I, K) -> fused (O, K*I), bf16 for the MXU ----
    def fuse_conv_w(w):                        # [o, k*I + i] = w[o, i, k]
        O, I, K = w.shape
        return jnp.transpose(w, (0, 2, 1)).reshape(O, K * I).astype(bf16)

    w1f = fuse_conv_w(params["conv1_w"])
    w2f = fuse_conv_w(params["conv2_w"])
    b1c = params["conv1_b"].astype(f32).reshape(-1, 1)
    b2c = params["conv2_b"].astype(f32).reshape(-1, 1)

    weight_args = [w1f, b1c, w2f, b2c]
    if has_skip_conv:
        wsf = params["convs_w"][:, :, 0].astype(bf16)      # k=1 conv -> matrix
        bsc = params["convs_b"].astype(f32).reshape(-1, 1)
        weight_args += [wsf, bsc]

    # ---- pad L to a lane-dense multiple of 128 (stats masked to true L) ----
    x_p = x if L_pad == L else jnp.pad(x, ((0, 0), (0, 0), (0, L_pad - L)))

    inv_L = 1.0 / L
    inv_Lm1 = 1.0 / max(L - 1, 1)              # torch.std is unbiased (ddof=1)

    # --------------------------------- kernel --------------------------------
    def kernel(x_ref, n1s_ref, n1b_ref, n2s_ref, n2b_ref,
               w1_ref, b1_ref, w2_ref, b2_ref, *rest):
        out_ref = rest[-1]

        x_t = x_ref[0].astype(f32)                            # (Cin, L_pad)
        lane = jax.lax.broadcasted_iota(jnp.int32, (Cin, L_pad), 1)  # hoisted
        valid = lane < L                                      # true-sequence mask
        zcol = jnp.zeros((Cin, 1), f32)

        def adain(h, s_col, b_col):
            # mean / unbiased std over the true L only (padded lanes masked out).
            mean = jnp.sum(jnp.where(valid, h, 0.0), -1, keepdims=True) * inv_L
            dev = jnp.where(valid, h - mean, 0.0)
            var = jnp.sum(dev * dev, -1, keepdims=True) * inv_Lm1
            std = jnp.sqrt(var) + EPS
            s = s_col / std                                   # (Cin, 1) only
            off = b_col - mean * s
            return h * s + off                                # fused scale/offset

        def relu_valid(h):
            # ReLU and zero the padded tail so the convs see exact zero padding.
            return jnp.where(valid, jnp.maximum(h, 0.0), 0.0)

        def conv3(h, w_ref, b_ref):
            # Fused k=3, padding=1 conv: one MXU matmul, contraction dim 3*Cin.
            left = jnp.concatenate([zcol, h[:, :L_pad - 1]], axis=1)   # h[l-1]
            right = jnp.concatenate([h[:, 1:], zcol], axis=1)          # h[l+1]
            stacked = jnp.concatenate([left, h, right], axis=0)        # (3Cin, L)
            acc = jnp.dot(w_ref[...], stacked.astype(bf16),
                          preferred_element_type=f32)
            return acc + b_ref[...]

        h = relu_valid(adain(x_t, n1s_ref[0], n1b_ref[0]))
        h = conv3(h, w1_ref, b1_ref)
        h = relu_valid(adain(h, n2s_ref[0], n2b_ref[0]))
        h = conv3(h, w2_ref, b2_ref)

        if has_skip_conv:
            ws_ref, bs_ref = rest[0], rest[1]
            skip = jnp.dot(ws_ref[...], x_t.astype(bf16),
                           preferred_element_type=f32) + bs_ref[...]
        else:
            skip = x_t

        out_ref[0] = (h + skip).astype(out_ref.dtype)

    # --------------------------------- specs ---------------------------------
    def per_sample_spec(ch, width):
        return pl.BlockSpec((1, ch, width), lambda b: (b, 0, 0))

    def resident_spec(a):                      # weights: same block every step
        return pl.BlockSpec(a.shape, lambda b, _nd=a.ndim: (0,) * _nd)

    in_specs = [
        per_sample_spec(Cin, L_pad),           # x
        per_sample_spec(Cin, 1),               # norm1 scale
        per_sample_spec(Cin, 1),               # norm1 bias
        per_sample_spec(Cin, 1),               # norm2 scale
        per_sample_spec(Cin, 1),               # norm2 bias
    ] + [resident_spec(a) for a in weight_args]
    out_specs = per_sample_spec(Cout, L_pad)

    # ---- explicit VMEM budget: double-buffered I/O + weights + live temps ----
    def nbytes(shape, dt):
        n = 1
        for d in shape:
            n *= d
        return n * jnp.dtype(dt).itemsize

    est = 2 * nbytes((Cin, L_pad), x.dtype)            # x block (double-buffered)
    est += 2 * nbytes((Cout, L_pad), f32)              # out block
    est += 2 * 4 * nbytes((Cin, 1), f32)               # style columns
    est += 2 * sum(int(a.size) * a.dtype.itemsize for a in weight_args)
    est += (8 * Cin + 3 * Cout) * L_pad * 4            # live intermediates
    vmem_limit = int(min(max(2 * est, 32 * 1024 * 1024), 100 * 1024 * 1024))

    out = pl.pallas_call(
        kernel,
        out_shape=jax.ShapeDtypeStruct((B, Cout, L_pad), f32),
        grid_spec=pltpu.PrefetchScalarGridSpec(
            num_scalar_prefetch=0,
            grid=(B,),
            in_specs=in_specs,
            out_specs=out_specs,
        ),
        compiler_params=pltpu.CompilerParams(
            dimension_semantics=("parallel",),     # batch shards across v7x's 2 TCs
            vmem_limit_bytes=vmem_limit,
        ),
    )(x_p, n1_scale, n1_bias, n2_scale, n2_bias, *weight_args)

    return out[:, :, :L], c


# ----------------------- deterministic parameter setup -----------------------

def init_params(key, in_ch, out_ch, c_in_ch):
    ks = iter(jax.random.split(key, 16))

    def rnd(shape, scale=0.1):
        return (scale * jax.random.normal(next(ks), shape)).astype(jnp.float32)

    p = {
        # AdaIN 1 (nn.Linear layouts: weight (out_features, in_features), bias (out,))
        "n1_bias_w": rnd((in_ch, c_in_ch)),  "n1_bias_b": rnd((in_ch,)),
        "n1_scale_w": rnd((in_ch, c_in_ch)), "n1_scale_b": 1.0 + rnd((in_ch,)),
        # Conv1d(in_ch, in_ch, k=3, padding=1): weight (out, in, k), bias (out,)
        "conv1_w": rnd((in_ch, in_ch, 3)),   "conv1_b": rnd((in_ch,)),
        # AdaIN 2
        "n2_bias_w": rnd((in_ch, c_in_ch)),  "n2_bias_b": rnd((in_ch,)),
        "n2_scale_w": rnd((in_ch, c_in_ch)), "n2_scale_b": 1.0 + rnd((in_ch,)),
        # Conv1d(in_ch, out_ch, k=3, padding=1)
        "conv2_w": rnd((out_ch, in_ch, 3)),  "conv2_b": rnd((out_ch,)),
    }
    if in_ch != out_ch:
        # Skip: Conv1d(in_ch, out_ch, k=1)
        p["convs_w"] = rnd((out_ch, in_ch, 1))
        p["convs_b"] = rnd((out_ch,))
    return p


# ------------------------------ pure-JAX reference ----------------------------

def res_block_ref(x, c, params):
    L = x.shape[-1]

    def adain(h, wb, bb, ws, bs):
        mean = h.mean(-1, keepdims=True)
        std = jnp.sqrt(((h - mean) ** 2).sum(-1, keepdims=True) / (L - 1)) + EPS
        yb = (c @ wb.T + bb)[:, :, None]
        ys = (c @ ws.T + bs)[:, :, None]
        return ys * (h - mean) / std + yb

    def conv1d(h, w, b, pad):
        y = jax.lax.conv_general_dilated(
            h, w, window_strides=(1,), padding=[(pad, pad)],
            dimension_numbers=("NCH", "OIH", "NCH"))
        return y + b.reshape(1, -1, 1)

    h = adain(x, params["n1_bias_w"], params["n1_bias_b"],
              params["n1_scale_w"], params["n1_scale_b"])
    h = jnp.maximum(h, 0.0)
    h = conv1d(h, params["conv1_w"], params["conv1_b"], 1)
    h = adain(h, params["n2_bias_w"], params["n2_bias_b"],
              params["n2_scale_w"], params["n2_scale_b"])
    h = jnp.maximum(h, 0.0)
    h = conv1d(h, params["conv2_w"], params["conv2_b"], 1)
    if "convs_w" in params:
        skip = conv1d(x, params["convs_w"], params["convs_b"], 0)
    else:
        skip = x
    return h + skip


# ----------------------------------- main -------------------------------------

if __name__ == "__main__":
    B, in_ch, out_ch, c_in_ch, L = 2, 8, 16, 4, 16

    key = jax.random.PRNGKey(0)
    kx, kc, kp = jax.random.split(key, 3)
    x = jax.random.normal(kx, (B, in_ch, L), dtype=jnp.float32)
    c = jax.random.normal(kc, (B, c_in_ch), dtype=jnp.float32)
    params = init_params(kp, in_ch, out_ch, c_in_ch)

    out, c_out = res_block(x, c, params)
    out = jax.block_until_ready(out)

    ref = res_block_ref(x, c, params)
    assert out.shape == (B, out_ch, L)
    max_err = float(jnp.max(jnp.abs(out - ref)))
    # bf16 MXU operands (f32 accumulation) -> tolerances relaxed vs pure-f32 ref.
    assert jnp.allclose(out, ref, rtol=2e-2, atol=3e-2), max_err
    assert jnp.array_equal(c_out, c)   # the style vector passes through untouched

    print("KERNEL_OK")
</pallas_src>

<mosaic_0001>
module attributes {stable_mosaic.version = 11 : i64} {
  func.func @kernel(%arg0: i32, %arg1: memref<1x8x128xf32, #tpu.memory_space<vmem>>, %arg2: memref<1x8x1xf32, #tpu.memory_space<vmem>>, %arg3: memref<1x8x1xf32, #tpu.memory_space<vmem>>, %arg4: memref<1x8x1xf32, #tpu.memory_space<vmem>>, %arg5: memref<1x8x1xf32, #tpu.memory_space<vmem>>, %arg6: memref<8x24xbf16, #tpu.memory_space<vmem>>, %arg7: memref<8x1xf32, #tpu.memory_space<vmem>>, %arg8: memref<16x24xbf16, #tpu.memory_space<vmem>>, %arg9: memref<16x1xf32, #tpu.memory_space<vmem>>, %arg10: memref<16x8xbf16, #tpu.memory_space<vmem>>, %arg11: memref<16x1xf32, #tpu.memory_space<vmem>>, %arg12: memref<1x16x128xf32, #tpu.memory_space<vmem>>) attributes {dimension_semantics = [#tpu.dimension_semantics<parallel>], iteration_bounds = array<i64: 2>, scalar_prefetch = 0 : i64, scratch_operands = 0 : i64, tpu.core_type = #tpu.core_type<tc>, window_params = [{transform_indices = @transform_0, window_bounds = array<i64: 1, 8, 128>}, {transform_indices = @transform_1, window_bounds = array<i64: 1, 8, 1>}, {transform_indices = @transform_2, window_bounds = array<i64: 1, 8, 1>}, {transform_indices = @transform_3, window_bounds = array<i64: 1, 8, 1>}, {transform_indices = @transform_4, window_bounds = array<i64: 1, 8, 1>}, {pipeline_mode = #tpu.pipeline_mode<synchronous>, transform_indices = @transform_5, window_bounds = array<i64: 8, 24>}, {pipeline_mode = #tpu.pipeline_mode<synchronous>, transform_indices = @transform_6, window_bounds = array<i64: 8, 1>}, {pipeline_mode = #tpu.pipeline_mode<synchronous>, transform_indices = @transform_7, window_bounds = array<i64: 16, 24>}, {pipeline_mode = #tpu.pipeline_mode<synchronous>, transform_indices = @transform_8, window_bounds = array<i64: 16, 1>}, {pipeline_mode = #tpu.pipeline_mode<synchronous>, transform_indices = @transform_9, window_bounds = array<i64: 16, 8>}, {pipeline_mode = #tpu.pipeline_mode<synchronous>, transform_indices = @transform_10, window_bounds = array<i64: 16, 1>}, {transform_indices = @transform_11, window_bounds = array<i64: 1, 16, 128>}]} {
    %c0 = arith.constant 0 : index
    %c0_0 = arith.constant 0 : index
    %c0_1 = arith.constant 0 : index
    %0 = vector.load %arg1[%c0, %c0_0, %c0_1] : memref<1x8x128xf32, #tpu.memory_space<vmem>>, vector<1x8x128xf32>
    %1 = vector.shape_cast %0 : vector<1x8x128xf32> to vector<8x128xf32>
    %2 = tpu.iota {dimensions = array<i32: 1>} : vector<8x128xi32>
    %c16_i32 = arith.constant 16 : i32
    %3 = vector.broadcast %c16_i32 : i32 to vector<8x128xi32>
    %4 = arith.cmpi slt, %2, %3 : vector<8x128xi32>
    %cst = arith.constant 0.000000e+00 : f32
    %5 = vector.broadcast %cst : f32 to vector<8x1xf32>
    %c0_2 = arith.constant 0 : index
    %c0_3 = arith.constant 0 : index
    %c0_4 = arith.constant 0 : index
    %6 = vector.load %arg2[%c0_2, %c0_3, %c0_4] : memref<1x8x1xf32, #tpu.memory_space<vmem>>, vector<1x8x1xf32>
    %7 = vector.shape_cast %6 : vector<1x8x1xf32> to vector<8x1xf32>
    %c0_5 = arith.constant 0 : index
    %c0_6 = arith.constant 0 : index
    %c0_7 = arith.constant 0 : index
    %8 = vector.load %arg3[%c0_5, %c0_6, %c0_7] : memref<1x8x1xf32, #tpu.memory_space<vmem>>, vector<1x8x1xf32>
    %9 = vector.shape_cast %8 : vector<1x8x1xf32> to vector<8x1xf32>
    %cst_8 = arith.constant 0.000000e+00 : f32
    %10 = vector.broadcast %cst_8 : f32 to vector<8x128xf32>
    %11 = arith.select %4, %1, %10 : vector<8x128xi1>, vector<8x128xf32>
    %cst_9 = arith.constant dense<0.000000e+00> : vector<8xf32>
    %12 = vector.multi_reduction <add>, %11, %cst_9 [1] : vector<8x128xf32> to vector<8xf32>
    %13 = vector.shape_cast %12 : vector<8xf32> to vector<8x1xf32>
    %cst_10 = arith.constant 6.250000e-02 : f32
    %14 = vector.broadcast %cst_10 : f32 to vector<8x1xf32>
    %15 = arith.mulf %13, %14 : vector<8x1xf32>
    %16 = vector.broadcast %15 : vector<8x1xf32> to vector<8x128xf32>
    %17 = arith.subf %1, %16 : vector<8x128xf32>
    %cst_11 = arith.constant 0.000000e+00 : f32
    %18 = vector.broadcast %cst_11 : f32 to vector<8x128xf32>
    %19 = arith.select %4, %17, %18 : vector<8x128xi1>, vector<8x128xf32>
    %20 = arith.mulf %19, %19 : vector<8x128xf32>
    %cst_12 = arith.constant dense<0.000000e+00> : vector<8xf32>
    %21 = vector.multi_reduction <add>, %20, %cst_12 [1] : vector<8x128xf32> to vector<8xf32>
    %22 = vector.shape_cast %21 : vector<8xf32> to vector<8x1xf32>
    %cst_13 = arith.constant 0.0666666701 : f32
    %23 = vector.broadcast %cst_13 : f32 to vector<8x1xf32>
    %24 = arith.mulf %22, %23 : vector<8x1xf32>
    %25 = math.sqrt %24 : vector<8x1xf32>
    %cst_14 = arith.constant 9.99999993E-9 : f32
    %26 = vector.broadcast %cst_14 : f32 to vector<8x1xf32>
    %27 = arith.addf %25, %26 : vector<8x1xf32>
    %28 = arith.divf %7, %27 : vector<8x1xf32>
    %29 = arith.mulf %15, %28 : vector<8x1xf32>
    %30 = arith.subf %9, %29 : vector<8x1xf32>
    %31 = vector.broadcast %28 : vector<8x1xf32> to vector<8x128xf32>
    %32 = arith.mulf %1, %31 : vector<8x128xf32>
    %33 = vector.broadcast %30 : vector<8x1xf32> to vector<8x128xf32>
    %34 = arith.addf %32, %33 : vector<8x128xf32>
    %cst_15 = arith.constant 0.000000e+00 : f32
    %35 = vector.broadcast %cst_15 : f32 to vector<8x128xf32>
    %36 = arith.maximumf %34, %35 : vector<8x128xf32>
    %cst_16 = arith.constant 0.000000e+00 : f32
    %37 = vector.broadcast %cst_16 : f32 to vector<8x128xf32>
    %38 = arith.select %4, %36, %37 : vector<8x128xi1>, vector<8x128xf32>
    %39 = vector.extract_strided_slice %38 {offsets = [0, 0], sizes = [8, 127], strides = [1, 1]} : vector<8x128xf32> to vector<8x127xf32>
    %40 = tpu.concatenate %5, %39 in 1 : vector<8x1xf32>, vector<8x127xf32> -> vector<8x128xf32>
    %41 = vector.extract_strided_slice %38 {offsets = [0, 1], sizes = [8, 127], strides = [1, 1]} : vector<8x128xf32> to vector<8x127xf32>
    %42 = tpu.concatenate %41, %5 in 1 : vector<8x127xf32>, vector<8x1xf32> -> vector<8x128xf32>
    %43 = tpu.concatenate %40, %38, %42 in 0 : vector<8x128xf32>, vector<8x128xf32>, vector<8x128xf32> -> vector<24x128xf32>
    %c0_17 = arith.constant 0 : index
    %c0_18 = arith.constant 0 : index
    %44 = vector.load %arg6[%c0_17, %c0_18] : memref<8x24xbf16, #tpu.memory_space<vmem>>, vector<8x24xbf16>
    %45 = arith.truncf %43 : vector<24x128xf32> to vector<24x128xbf16>
    %cst_19 = arith.constant dense<0.000000e+00> : vector<8x128xf32>
    %46 = tpu.matmul %44, %45, %cst_19 {dimension_numbers = #tpu.dot_dimension_numbers<[1], [0], [0], [1], [0, 0, 1, 1], [], []>} : vector<8x24xbf16>, vector<24x128xbf16>, vector<8x128xf32> -> vector<8x128xf32>
    %c0_20 = arith.constant 0 : index
    %c0_21 = arith.constant 0 : index
    %47 = vector.load %arg7[%c0_20, %c0_21] : memref<8x1xf32, #tpu.memory_space<vmem>>, vector<8x1xf32>
    %48 = vector.broadcast %47 : vector<8x1xf32> to vector<8x128xf32>
    %49 = arith.addf %46, %48 : vector<8x128xf32>
    %c0_22 = arith.constant 0 : index
    %c0_23 = arith.constant 0 : index
    %c0_24 = arith.constant 0 : index
    %50 = vector.load %arg4[%c0_22, %c0_23, %c0_24] : memref<1x8x1xf32, #tpu.memory_space<vmem>>, vector<1x8x1xf32>
    %51 = vector.shape_cast %50 : vector<1x8x1xf32> to vector<8x1xf32>
    %c0_25 = arith.constant 0 : index
    %c0_26 = arith.constant 0 : index
    %c0_27 = arith.constant 0 : index
    %52 = vector.load %arg5[%c0_25, %c0_26, %c0_27] : memref<1x8x1xf32, #tpu.memory_space<vmem>>, vector<1x8x1xf32>
    %53 = vector.shape_cast %52 : vector<1x8x1xf32> to vector<8x1xf32>
    %cst_28 = arith.constant 0.000000e+00 : f32
    %54 = vector.broadcast %cst_28 : f32 to vector<8x128xf32>
    %55 = arith.select %4, %49, %54 : vector<8x128xi1>, vector<8x128xf32>
    %cst_29 = arith.constant dense<0.000000e+00> : vector<8xf32>
    %56 = vector.multi_reduction <add>, %55, %cst_29 [1] : vector<8x128xf32> to vector<8xf32>
    %57 = vector.shape_cast %56 : vector<8xf32> to vector<8x1xf32>
    %cst_30 = arith.constant 6.250000e-02 : f32
    %58 = vector.broadcast %cst_30 : f32 to vector<8x1xf32>
    %59 = arith.mulf %57, %58 : vector<8x1xf32>
    %60 = vector.broadcast %59 : vector<8x1xf32> to vector<8x128xf32>
    %61 = arith.subf %49, %60 : vector<8x128xf32>
    %cst_31 = arith.constant 0.000000e+00 : f32
    %62 = vector.broadcast %cst_31 : f32 to vector<8x128xf32>
    %63 = arith.select %4, %61, %62 : vector<8x128xi1>, vector<8x128xf32>
    %64 = arith.mulf %63, %63 : vector<8x128xf32>
    %cst_32 = arith.constant dense<0.000000e+00> : vector<8xf32>
    %65 = vector.multi_reduction <add>, %64, %cst_32 [1] : vector<8x128xf32> to vector<8xf32>
    %66 = vector.shape_cast %65 : vector<8xf32> to vector<8x1xf32>
    %cst_33 = arith.constant 0.0666666701 : f32
    %67 = vector.broadcast %cst_33 : f32 to vector<8x1xf32>
    %68 = arith.mulf %66, %67 : vector<8x1xf32>
    %69 = math.sqrt %68 : vector<8x1xf32>
    %cst_34 = arith.constant 9.99999993E-9 : f32
    %70 = vector.broadcast %cst_34 : f32 to vector<8x1xf32>
    %71 = arith.addf %69, %70 : vector<8x1xf32>
    %72 = arith.divf %51, %71 : vector<8x1xf32>
    %73 = arith.mulf %59, %72 : vector<8x1xf32>
    %74 = arith.subf %53, %73 : vector<8x1xf32>
    %75 = vector.broadcast %72 : vector<8x1xf32> to vector<8x128xf32>
    %76 = arith.mulf %49, %75 : vector<8x128xf32>
    %77 = vector.broadcast %74 : vector<8x1xf32> to vector<8x128xf32>
    %78 = arith.addf %76, %77 : vector<8x128xf32>
    %cst_35 = arith.constant 0.000000e+00 : f32
    %79 = vector.broadcast %cst_35 : f32 to vector<8x128xf32>
    %80 = arith.maximumf %78, %79 : vector<8x128xf32>
    %cst_36 = arith.constant 0.000000e+00 : f32
    %81 = vector.broadcast %cst_36 : f32 to vector<8x128xf32>
    %82 = arith.select %4, %80, %81 : vector<8x128xi1>, vector<8x128xf32>
    %83 = vector.extract_strided_slice %82 {offsets = [0, 0], sizes = [8, 127], strides = [1, 1]} : vector<8x128xf32> to vector<8x127xf32>
    %84 = tpu.concatenate %5, %83 in 1 : vector<8x1xf32>, vector<8x127xf32> -> vector<8x128xf32>
    %85 = vector.extract_strided_slice %82 {offsets = [0, 1], sizes = [8, 127], strides = [1, 1]} : vector<8x128xf32> to vector<8x127xf32>
    %86 = tpu.concatenate %85, %5 in 1 : vector<8x127xf32>, vector<8x1xf32> -> vector<8x128xf32>
    %87 = tpu.concatenate %84, %82, %86 in 0 : vector<8x128xf32>, vector<8x128xf32>, vector<8x128xf32> -> vector<24x128xf32>
    %c0_37 = arith.constant 0 : index
    %c0_38 = arith.constant 0 : index
    %88 = vector.load %arg8[%c0_37, %c0_38] : memref<16x24xbf16, #tpu.memory_space<vmem>>, vector<16x24xbf16>
    %89 = arith.truncf %87 : vector<24x128xf32> to vector<24x128xbf16>
    %cst_39 = arith.constant dense<0.000000e+00> : vector<16x128xf32>
    %90 = tpu.matmul %88, %89, %cst_39 {dimension_numbers = #tpu.dot_dimension_numbers<[1], [0], [0], [1], [0, 0, 1, 1], [], []>} : vector<16x24xbf16>, vector<24x128xbf16>, vector<16x128xf32> -> vector<16x128xf32>
    %c0_40 = arith.constant 0 : index
    %c0_41 = arith.constant 0 : index
    %91 = vector.load %arg9[%c0_40, %c0_41] : memref<16x1xf32, #tpu.memory_space<vmem>>, vector<16x1xf32>
    %92 = vector.broadcast %91 : vector<16x1xf32> to vector<16x128xf32>
    %93 = arith.addf %90, %92 : vector<16x128xf32>
    %c0_42 = arith.constant 0 : index
    %c0_43 = arith.constant 0 : index
    %94 = vector.load %arg10[%c0_42, %c0_43] : memref<16x8xbf16, #tpu.memory_space<vmem>>, vector<16x8xbf16>
    %95 = arith.truncf %1 : vector<8x128xf32> to vector<8x128xbf16>
    %cst_44 = arith.constant dense<0.000000e+00> : vector<16x128xf32>
    %96 = tpu.matmul %94, %95, %cst_44 {dimension_numbers = #tpu.dot_dimension_numbers<[1], [0], [0], [1], [0, 0, 1, 1], [], []>} : vector<16x8xbf16>, vector<8x128xbf16>, vector<16x128xf32> -> vector<16x128xf32>
    %c0_45 = arith.constant 0 : index
    %c0_46 = arith.constant 0 : index
    %97 = vector.load %arg11[%c0_45, %c0_46] : memref<16x1xf32, #tpu.memory_space<vmem>>, vector<16x1xf32>
    %98 = vector.broadcast %97 : vector<16x1xf32> to vector<16x128xf32>
    %99 = arith.addf %96, %98 : vector<16x128xf32>
    %100 = arith.addf %93, %99 : vector<16x128xf32>
    %c0_47 = arith.constant 0 : index
    %c0_48 = arith.constant 0 : index
    %c0_49 = arith.constant 0 : index
    %101 = vector.load %arg12[%c0_47, %c0_48, %c0_49] : memref<1x16x128xf32, #tpu.memory_space<vmem>>, vector<1x16x128xf32>
    %102 = vector.shape_cast %101 : vector<1x16x128xf32> to vector<16x128xf32>
    %103 = vector.shape_cast %100 : vector<16x128xf32> to vector<1x16x128xf32>
    tpu.vector_store %arg12[%c0_47, %c0_48, %c0_49], %103 {strides = array<i32>} : memref<1x16x128xf32, #tpu.memory_space<vmem>>, vector<1x16x128xf32>,
    return
  }
  func.func @transform_0(%arg0: i32) -> (i32, i32, i32) {
    %c0_i32 = arith.constant 0 : i32
    %c0_i32_0 = arith.constant 0 : i32
    %c0_i32_1 = arith.constant 0 : i32
    return %arg0, %c0_i32, %c0_i32_0 : i32, i32, i32
  }
  func.func @transform_1(%arg0: i32) -> (i32, i32, i32) {
    %c0_i32 = arith.constant 0 : i32
    %c0_i32_0 = arith.constant 0 : i32
    %c0_i32_1 = arith.constant 0 : i32
    return %arg0, %c0_i32, %c0_i32_0 : i32, i32, i32
  }
  func.func @transform_2(%arg0: i32) -> (i32, i32, i32) {
    %c0_i32 = arith.constant 0 : i32
    %c0_i32_0 = arith.constant 0 : i32
    %c0_i32_1 = arith.constant 0 : i32
    return %arg0, %c0_i32, %c0_i32_0 : i32, i32, i32
  }
  func.func @transform_3(%arg0: i32) -> (i32, i32, i32) {
    %c0_i32 = arith.constant 0 : i32
    %c0_i32_0 = arith.constant 0 : i32
    %c0_i32_1 = arith.constant 0 : i32
    return %arg0, %c0_i32, %c0_i32_0 : i32, i32, i32
  }
  func.func @transform_4(%arg0: i32) -> (i32, i32, i32) {
    %c0_i32 = arith.constant 0 : i32
    %c0_i32_0 = arith.constant 0 : i32
    %c0_i32_1 = arith.constant 0 : i32
    return %arg0, %c0_i32, %c0_i32_0 : i32, i32, i32
  }
  func.func @transform_5(%arg0: i32) -> (i32, i32) {
    %c0_i32 = arith.constant 0 : i32
    %c0_i32_0 = arith.constant 0 : i32
    %c0_i32_1 = arith.constant 0 : i32
    return %c0_i32, %c0_i32_0 : i32, i32
  }
  func.func @transform_6(%arg0: i32) -> (i32, i32) {
    %c0_i32 = arith.constant 0 : i32
    %c0_i32_0 = arith.constant 0 : i32
    %c0_i32_1 = arith.constant 0 : i32
    return %c0_i32, %c0_i32_0 : i32, i32
  }
  func.func @transform_7(%arg0: i32) -> (i32, i32) {
    %c0_i32 = arith.constant 0 : i32
    %c0_i32_0 = arith.constant 0 : i32
    %c0_i32_1 = arith.constant 0 : i32
    return %c0_i32, %c0_i32_0 : i32, i32
  }
  func.func @transform_8(%arg0: i32) -> (i32, i32) {
    %c0_i32 = arith.constant 0 : i32
    %c0_i32_0 = arith.constant 0 : i32
    %c0_i32_1 = arith.constant 0 : i32
    return %c0_i32, %c0_i32_0 : i32, i32
  }
  func.func @transform_9(%arg0: i32) -> (i32, i32) {
    %c0_i32 = arith.constant 0 : i32
    %c0_i32_0 = arith.constant 0 : i32
    %c0_i32_1 = arith.constant 0 : i32
    return %c0_i32, %c0_i32_0 : i32, i32
  }
  func.func @transform_10(%arg0: i32) -> (i32, i32) {
    %c0_i32 = arith.constant 0 : i32
    %c0_i32_0 = arith.constant 0 : i32
    %c0_i32_1 = arith.constant 0 : i32
    return %c0_i32, %c0_i32_0 : i32, i32
  }
  func.func @transform_11(%arg0: i32) -> (i32, i32, i32) {
    %c0_i32 = arith.constant 0 : i32
    %c0_i32_0 = arith.constant 0 : i32
    %c0_i32_1 = arith.constant 0 : i32
    return %arg0, %c0_i32, %c0_i32_0 : i32, i32, i32
  }
}

</mosaic_0001>

<llo_original>
// kernel: tpu_custom_call.1
$region0: #{tpu_custom_call.1}
  #allocation0 [shape = 'u32[]', space=smem, size = 0x4, offset = 0x4, fixed_abs, tag = 'smem constant byte address 0x4 - core index']
  #allocation1 [shape = 'u32[144,128]{1,0:T(1,128)}', space=vmem, size = 0x12000, scoped, tag = 'internal scratch']
  %s0 = inlined_call_operand.vmem [shape: f32[2,8,128], index: 0, kind: input, shape index: {}]
  %s1 = inlined_call_operand.vmem [shape: f32[2,8,1], index: 1, kind: input, shape index: {}]
  %s2 = inlined_call_operand.vmem [shape: f32[2,8,1], index: 2, kind: input, shape index: {}]
  %s3 = inlined_call_operand.vmem [shape: f32[2,8,1], index: 3, kind: input, shape index: {}]
  %s4 = inlined_call_operand.vmem [shape: f32[2,8,1], index: 4, kind: input, shape index: {}]
  %s5 = inlined_call_operand.vmem [shape: bf16[8,24], index: 5, kind: input, shape index: {}]
  %s6 = inlined_call_operand.vmem [shape: f32[8,1], index: 6, kind: input, shape index: {}]
  %s7 = inlined_call_operand.vmem [shape: bf16[16,24], index: 7, kind: input, shape index: {}]
  %s8 = inlined_call_operand.vmem [shape: f32[16,1], index: 8, kind: input, shape index: {}]
  %s9 = inlined_call_operand.vmem [shape: bf16[16,8], index: 9, kind: input, shape index: {}]
  %s10 = inlined_call_operand.vmem [shape: f32[16,1], index: 10, kind: input, shape index: {}]
  %s11 = inlined_call_operand.hbm [shape: f32[2,16,128], index: 11, kind: output, shape index: {}]
  %s12 = sld [smem:[#allocation0]]
  $region77: #{tpu_custom_call.1} parent=0
    _
  %s14 = ssub.s32 1, %s12
  %s15 = scalar_select 0, %s14, %s12
  $region1: #{tpu_custom_call.1} parent=0
    #allocation2 [shape = 'u8[16384]{0}', space=vmem, size = 0x4000, scoped, tag = 'output window, operand 0']
    #allocation3 [shape = 's32[2]{0}', space=sflag, size = 0x8, scoped, tag = 'scoped memory for tpu_custom_call.1']
    %16 = vsyncpa [#allocation3], 0
    %s17 = scalar_lea.sflag [#allocation3], 1
    %18 = vsyncpa %s17, 0
    loop: start=0, step=1, limit=4
    $region2: #{tpu_custom_call.1} parent=1 // loop_pre_header
      _
    $region3: #{tpu_custom_call.1} parent=1 // loop_header
      %s20 = sphi 0, %s24
      %p21 = scmp.ge.s32.totalorder %s20, 4
      %s30 = sphi 0, %s32
      %s33 = sphi 0, %s30
      %s34 = sphi 0, %s33
      %s50 = sphi 0, %s34
      %s56 = sphi 0, %s58
      %s59 = sphi 0, %s56
      %s60 = sphi 0, %s59
      %s76 = sphi 0, %s60
      %s82 = sphi 0, %s84
      %s85 = sphi 0, %s82
      %s86 = sphi 0, %s85
      %s102 = sphi 0, %s86
      %s108 = sphi 0, %s110
      %s111 = sphi 0, %s108
      %s112 = sphi 0, %s111
      %s128 = sphi 0, %s112
      %s134 = sphi 0, %s136
      %s137 = sphi 0, %s134
      %s138 = sphi 0, %s137
      %s154 = sphi 0, %s138
      %s158 = sphi 0, %s158
      %s160 = sphi 0, %s158
      %s161 = sphi 0, %s160
      %s175 = sphi 0, %s161
      %s179 = sphi 0, %s179
      %s181 = sphi 0, %s179
      %s182 = sphi 0, %s181
      %s196 = sphi 0, %s182
      %s200 = sphi 0, %s200
      %s202 = sphi 0, %s200
      %s203 = sphi 0, %s202
      %s217 = sphi 0, %s203
      %s221 = sphi 0, %s221
      %s223 = sphi 0, %s221
      %s224 = sphi 0, %s223
      %s238 = sphi 0, %s224
      %s242 = sphi 0, %s242
      %s244 = sphi 0, %s242
      %s245 = sphi 0, %s244
      %s259 = sphi 0, %s245
      %s263 = sphi 0, %s263
      %s265 = sphi 0, %s263
      %s266 = sphi 0, %s265
      %s280 = sphi 0, %s266
      %s286 = sphi 0, %s288
      %s289 = sphi 0, %s286
      %s290 = sphi 0, %s289
      %s306 = sphi 0, %s290
    $region4: #{tpu_custom_call.1} parent=1 // loop_header_branch
      %23 = sbr.rel (%p21) target = $region8
    $region5: #{tpu_custom_call.1} parent=1 // loop_body
      %s25 = ssub.s32 %s20, 1
      %s26 = ssub.s32 %s20, 2
      %s27 = sadd.s32 %s20, 1
      %s28 = ssub.s32 %s20, %s27
      %p29 = scmp.eq.s32.totalorder %s28, 0
      %s31 = sadd.s32 %s30, 1
      %s32 = scalar_select %p29, %s30, %s31
      %p35 = pneg %p29
      %p36 = scmp.eq.s32.totalorder %s20, 1
      %p37 = por %p35, %p36
      %p38 = scmp.ne.s32.totalorder %s30, %s33
      %p39 = scmp.eq.s32.totalorder %s20, 0
      %p40 = por %p38, %p39
      %p41 = scmp.ne.s32.totalorder %s30, %s33
      %p42 = scmp.eq.s32.totalorder %s25, 1
      %p43 = por %p41, %p42
      %p44 = scmp.ne.s32.totalorder %s33, %s34
      %p45 = scmp.eq.s32.totalorder %s25, 0
      %p46 = por %p44, %p45
      %p47 = scmp.ne.s32.totalorder %s33, %s34
      %p48 = scmp.eq.s32.totalorder %s26, 1
      %p49 = por %p47, %p48
      %p51 = scmp.ne.s32.totalorder %s34, %s50
      %p52 = scmp.eq.s32.totalorder %s26, 0
      %p53 = por %p51, %p52
      %s54 = ssub.s32 %s20, %s27
      %p55 = scmp.eq.s32.totalorder %s54, 0
      %s57 = sadd.s32 %s56, 1
      %s58 = scalar_select %p55, %s56, %s57
      %p61 = pneg %p55
      %p62 = scmp.eq.s32.totalorder %s20, 1
      %p63 = por %p61, %p62
      %p64 = scmp.ne.s32.totalorder %s56, %s59
      %p65 = scmp.eq.s32.totalorder %s20, 0
      %p66 = por %p64, %p65
      %p67 = scmp.ne.s32.totalorder %s56, %s59
      %p68 = scmp.eq.s32.totalorder %s25, 1
      %p69 = por %p67, %p68
      %p70 = scmp.ne.s32.totalorder %s59, %s60
      %p71 = scmp.eq.s32.totalorder %s25, 0
      %p72 = por %p70, %p71
      %p73 = scmp.ne.s32.totalorder %s59, %s60
      %p74 = scmp.eq.s32.totalorder %s26, 1
      %p75 = por %p73, %p74
      %p77 = scmp.ne.s32.totalorder %s60, %s76
      %p78 = scmp.eq.s32.totalorder %s26, 0
      %p79 = por %p77, %p78
      %s80 = ssub.s32 %s20, %s27
      %p81 = scmp.eq.s32.totalorder %s80, 0
      %s83 = sadd.s32 %s82, 1
      %s84 = scalar_select %p81, %s82, %s83
      %p87 = pneg %p81
      %p88 = scmp.eq.s32.totalorder %s20, 1
      %p89 = por %p87, %p88
      %p90 = scmp.ne.s32.totalorder %s82, %s85
      %p91 = scmp.eq.s32.totalorder %s20, 0
      %p92 = por %p90, %p91
      %p93 = scmp.ne.s32.totalorder %s82, %s85
      %p94 = scmp.eq.s32.totalorder %s25, 1
      %p95 = por %p93, %p94
      %p96 = scmp.ne.s32.totalorder %s85, %s86
      %p97 = scmp.eq.s32.totalorder %s25, 0
      %p98 = por %p96, %p97
      %p99 = scmp.ne.s32.totalorder %s85, %s86
      %p100 = scmp.eq.s32.totalorder %s26, 1
      %p101 = por %p99, %p100
      %p103 = scmp.ne.s32.totalorder %s86, %s102
      %p104 = scmp.eq.s32.totalorder %s26, 0
      %p105 = por %p103, %p104
      %s106 = ssub.s32 %s20, %s27
      %p107 = scmp.eq.s32.totalorder %s106, 0
      %s109 = sadd.s32 %s108, 1
      %s110 = scalar_select %p107, %s108, %s109
      %p113 = pneg %p107
      %p114 = scmp.eq.s32.totalorder %s20, 1
      %p115 = por %p113, %p114
      %p116 = scmp.ne.s32.totalorder %s108, %s111
      %p117 = scmp.eq.s32.totalorder %s20, 0
      %p118 = por %p116, %p117
      %p119 = scmp.ne.s32.totalorder %s108, %s111
      %p120 = scmp.eq.s32.totalorder %s25, 1
      %p121 = por %p119, %p120
      %p122 = scmp.ne.s32.totalorder %s111, %s112
      %p123 = scmp.eq.s32.totalorder %s25, 0
      %p124 = por %p122, %p123
      %p125 = scmp.ne.s32.totalorder %s111, %s112
      %p126 = scmp.eq.s32.totalorder %s26, 1
      %p127 = por %p125, %p126
      %p129 = scmp.ne.s32.totalorder %s112, %s128
      %p130 = scmp.eq.s32.totalorder %s26, 0
      %p131 = por %p129, %p130
      %s132 = ssub.s32 %s20, %s27
      %p133 = scmp.eq.s32.totalorder %s132, 0
      %s135 = sadd.s32 %s134, 1
      %s136 = scalar_select %p133, %s134, %s135
      %p139 = pneg %p133
      %p140 = scmp.eq.s32.totalorder %s20, 1
      %p141 = por %p139, %p140
      %p142 = scmp.ne.s32.totalorder %s134, %s137
      %p143 = scmp.eq.s32.totalorder %s20, 0
      %p144 = por %p142, %p143
      %p145 = scmp.ne.s32.totalorder %s134, %s137
      %p146 = scmp.eq.s32.totalorder %s25, 1
      %p147 = por %p145, %p146
      %p148 = scmp.ne.s32.totalorder %s137, %s138
      %p149 = scmp.eq.s32.totalorder %s25, 0
      %p150 = por %p148, %p149
      %p151 = scmp.ne.s32.totalorder %s137, %s138
      %p152 = scmp.eq.s32.totalorder %s26, 1
      %p153 = por %p151, %p152
      %p155 = scmp.ne.s32.totalorder %s138, %s154
      %p156 = scmp.eq.s32.totalorder %s26, 0
      %p157 = por %p155, %p156
      %s159 = sadd.s32 %s158, 1
      %p162 = scmp.eq.s32.totalorder %s20, 1
      %p163 = scmp.ne.s32.totalorder %s158, %s160
      %p164 = scmp.eq.s32.totalorder %s20, 0
      %p165 = por %p163, %p164
      %p166 = scmp.ne.s32.totalorder %s158, %s160
      %p167 = scmp.eq.s32.totalorder %s25, 1
      %p168 = por %p166, %p167
      %p169 = scmp.ne.s32.totalorder %s160, %s161
      %p170 = scmp.eq.s32.totalorder %s25, 0
      %p171 = por %p169, %p170
      %p172 = scmp.ne.s32.totalorder %s160, %s161
      %p173 = scmp.eq.s32.totalorder %s26, 1
      %p174 = por %p172, %p173
      %p176 = scmp.ne.s32.totalorder %s161, %s175
      %p177 = scmp.eq.s32.totalorder %s26, 0
      %p178 = por %p176, %p177
      %s180 = sadd.s32 %s179, 1
      %p183 = scmp.eq.s32.totalorder %s20, 1
      %p184 = scmp.ne.s32.totalorder %s179, %s181
      %p185 = scmp.eq.s32.totalorder %s20, 0
      %p186 = por %p184, %p185
      %p187 = scmp.ne.s32.totalorder %s179, %s181
      %p188 = scmp.eq.s32.totalorder %s25, 1
      %p189 = por %p187, %p188
      %p190 = scmp.ne.s32.totalorder %s181, %s182
      %p191 = scmp.eq.s32.totalorder %s25, 0
      %p192 = por %p190, %p191
      %p193 = scmp.ne.s32.totalorder %s181, %s182
      %p194 = scmp.eq.s32.totalorder %s26, 1
      %p195 = por %p193, %p194
      %p197 = scmp.ne.s32.totalorder %s182, %s196
      %p198 = scmp.eq.s32.totalorder %s26, 0
      %p199 = por %p197, %p198
      %s201 = sadd.s32 %s200, 1
      %p204 = scmp.eq.s32.totalorder %s20, 1
      %p205 = scmp.ne.s32.totalorder %s200, %s202
      %p206 = scmp.eq.s32.totalorder %s20, 0
      %p207 = por %p205, %p206
      %p208 = scmp.ne.s32.totalorder %s200, %s202
      %p209 = scmp.eq.s32.totalorder %s25, 1
      %p210 = por %p208, %p209
      %p211 = scmp.ne.s32.totalorder %s202, %s203
      %p212 = scmp.eq.s32.totalorder %s25, 0
      %p213 = por %p211, %p212
      %p214 = scmp.ne.s32.totalorder %s202, %s203
      %p215 = scmp.eq.s32.totalorder %s26, 1
      %p216 = por %p214, %p215
      %p218 = scmp.ne.s32.totalorder %s203, %s217
      %p219 = scmp.eq.s32.totalorder %s26, 0
      %p220 = por %p218, %p219
      %s222 = sadd.s32 %s221, 1
      %p225 = scmp.eq.s32.totalorder %s20, 1
      %p226 = scmp.ne.s32.totalorder %s221, %s223
      %p227 = scmp.eq.s32.totalorder %s20, 0
      %p228 = por %p226, %p227
      %p229 = scmp.ne.s32.totalorder %s221, %s223
      %p230 = scmp.eq.s32.totalorder %s25, 1
      %p231 = por %p229, %p230
      %p232 = scmp.ne.s32.totalorder %s223, %s224
      %p233 = scmp.eq.s32.totalorder %s25, 0
      %p234 = por %p232, %p233
      %p235 = scmp.ne.s32.totalorder %s223, %s224
      %p236 = scmp.eq.s32.totalorder %s26, 1
      %p237 = por %p235, %p236
      %p239 = scmp.ne.s32.totalorder %s224, %s238
      %p240 = scmp.eq.s32.totalorder %s26, 0
      %p241 = por %p239, %p240
      %s243 = sadd.s32 %s242, 1
      %p246 = scmp.eq.s32.totalorder %s20, 1
      %p247 = scmp.ne.s32.totalorder %s242, %s244
      %p248 = scmp.eq.s32.totalorder %s20, 0
      %p249 = por %p247, %p248
      %p250 = scmp.ne.s32.totalorder %s242, %s244
      %p251 = scmp.eq.s32.totalorder %s25, 1
      %p252 = por %p250, %p251
      %p253 = scmp.ne.s32.totalorder %s244, %s245
      %p254 = scmp.eq.s32.totalorder %s25, 0
      %p255 = por %p253, %p254
      %p256 = scmp.ne.s32.totalorder %s244, %s245
      %p257 = scmp.eq.s32.totalorder %s26, 1
      %p258 = por %p256, %p257
      %p260 = scmp.ne.s32.totalorder %s245, %s259
      %p261 = scmp.eq.s32.totalorder %s26, 0
      %p262 = por %p260, %p261
      %s264 = sadd.s32 %s263, 1
      %p267 = scmp.eq.s32.totalorder %s20, 1
      %p268 = scmp.ne.s32.totalorder %s263, %s265
      %p269 = scmp.eq.s32.totalorder %s20, 0
      %p270 = por %p268, %p269
      %p271 = scmp.ne.s32.totalorder %s263, %s265
      %p272 = scmp.eq.s32.totalorder %s25, 1
      %p273 = por %p271, %p272
      %p274 = scmp.ne.s32.totalorder %s265, %s266
      %p275 = scmp.eq.s32.totalorder %s25, 0
      %p276 = por %p274, %p275
      %p277 = scmp.ne.s32.totalorder %s265, %s266
      %p278 = scmp.eq.s32.totalorder %s26, 1
      %p279 = por %p277, %p278
      %p281 = scmp.ne.s32.totalorder %s266, %s280
      %p282 = scmp.eq.s32.totalorder %s26, 0
      %p283 = por %p281, %p282
      %s284 = ssub.s32 %s20, %s27
      %p285 = scmp.eq.s32.totalorder %s284, 0
      %s287 = sadd.s32 %s286, 1
      %s288 = scalar_select %p285, %s286, %s287
      %p291 = pneg %p285
      %p292 = scmp.eq.s32.totalorder %s20, 1
      %p293 = por %p291, %p292
      %p294 = scmp.ne.s32.totalorder %s286, %s289
      %p295 = scmp.eq.s32.totalorder %s20, 0
      %p296 = por %p294, %p295
      %p297 = scmp.ne.s32.totalorder %s286, %s289
      %p298 = scmp.eq.s32.totalorder %s25, 1
      %p299 = por %p297, %p298
      %p300 = scmp.ne.s32.totalorder %s289, %s290
      %p301 = scmp.eq.s32.totalorder %s25, 0
      %p302 = por %p300, %p301
      %p303 = scmp.ne.s32.totalorder %s289, %s290
      %p304 = scmp.eq.s32.totalorder %s26, 1
      %p305 = por %p303, %p304
      %p307 = scmp.ne.s32.totalorder %s290, %s306
      %p308 = scmp.eq.s32.totalorder %s26, 0
      %p309 = por %p307, %p308
      %p310 = scmp.le.s32.totalorder 1, %s20
      %p311 = scmp.lt.s32.totalorder %s20, 3
      %p312 = pnand %p310, %p311
      %p313 = pneg %p312
      // Predicated region
      $region9: #{tpu_custom_call.1} parent=5 // pred_check
        _
      $region10: #{tpu_custom_call.1} parent=5 // pred_check_branch
        %315 = sbr.rel (%p312) target = $region12
      $region11: #{tpu_custom_call.1} parent=5 // pred_region
        %s316 = ssub.s32 %s20, 1
        // Predicated region
        $region13: #{tpu_custom_call.1} parent=11 // pred_check
          %p317 = pneg %p171
        $region14: #{tpu_custom_call.1} parent=11 // pred_check_branch
          %319 = sbr.rel (%p317) target = $region16
        $region15: #{tpu_custom_call.1} parent=11 // pred_region
          _
        $region16: #{tpu_custom_call.1} parent=11 // pred_fallthru
          _
        // Predicated region
        $region17: #{tpu_custom_call.1} parent=11 // pred_check
          %p320 = pneg %p192
        $region18: #{tpu_custom_call.1} parent=11 // pred_check_branch
          %322 = sbr.rel (%p320) target = $region20
        $region19: #{tpu_custom_call.1} parent=11 // pred_region
          _
        $region20: #{tpu_custom_call.1} parent=11 // pred_fallthru
          _
        // Predicated region
        $region21: #{tpu_custom_call.1} parent=11 // pred_check
          %p323 = pneg %p213
        $region22: #{tpu_custom_call.1} parent=11 // pred_check_branch
          %325 = sbr.rel (%p323) target = $region24
        $region23: #{tpu_custom_call.1} parent=11 // pred_region
          _
        $region24: #{tpu_custom_call.1} parent=11 // pred_fallthru
          _
        // Predicated region
        $region25: #{tpu_custom_call.1} parent=11 // pred_check
          %p326 = pneg %p234
        $region26: #{tpu_custom_call.1} parent=11 // pred_check_branch
          %328 = sbr.rel (%p326) target = $region28
        $region27: #{tpu_custom_call.1} parent=11 // pred_region
          _
        $region28: #{tpu_custom_call.1} parent=11 // pred_fallthru
          _
        // Predicated region
        $region29: #{tpu_custom_call.1} parent=11 // pred_check
          %p329 = pneg %p255
        $region30: #{tpu_custom_call.1} parent=11 // pred_check_branch
          %331 = sbr.rel (%p329) target = $region32
        $region31: #{tpu_custom_call.1} parent=11 // pred_region
          _
        $region32: #{tpu_custom_call.1} parent=11 // pred_fallthru
          _
        // Predicated region
        $region33: #{tpu_custom_call.1} parent=11 // pred_check
          %p332 = pneg %p276
        $region34: #{tpu_custom_call.1} parent=11 // pred_check_branch
          %334 = sbr.rel (%p332) target = $region36
        $region35: #{tpu_custom_call.1} parent=11 // pred_region
          _
        $region36: #{tpu_custom_call.1} parent=11 // pred_fallthru
          _
      $region12: #{tpu_custom_call.1} parent=5 // pred_fallthru
        _
      %p335 = scmp.lt.s32.totalorder %s20, 2
      // Predicated region
      $region37: #{tpu_custom_call.1} parent=5 // pred_check
        %p336 = pneg %p335
      $region38: #{tpu_custom_call.1} parent=5 // pred_check_branch
        %338 = sbr.rel (%p336) target = $region40
      $region39: #{tpu_custom_call.1} parent=5 // pred_region
        // Predicated region
        $region41: #{tpu_custom_call.1} parent=39 // pred_check
          %p339 = pneg %p40
        $region42: #{tpu_custom_call.1} parent=39 // pred_check_branch
          %341 = sbr.rel (%p339) target = $region44
        $region43: #{tpu_custom_call.1} parent=39 // pred_region
          %p342 = scmp.lt.s32.totalorder %s20, 1
          %s343 = scalar_select %p342, %s20, 1
          %s344 = smul.addr %s343, 8
          %s345 = scalar_lea.vmem %s0, %s344
        $region44: #{tpu_custom_call.1} parent=39 // pred_fallthru
          _
        // Predicated region
        $region45: #{tpu_custom_call.1} parent=39 // pred_check
          %p346 = pneg %p66
        $region46: #{tpu_custom_call.1} parent=39 // pred_check_branch
          %348 = sbr.rel (%p346) target = $region48
        $region47: #{tpu_custom_call.1} parent=39 // pred_region
          %p349 = scmp.lt.s32.totalorder %s20, 1
          %s350 = scalar_select %p349, %s20, 1
          %s351 = smul.addr %s350, 8
          %s352 = scalar_lea.vmem %s1, %s351
        $region48: #{tpu_custom_call.1} parent=39 // pred_fallthru
          _
        // Predicated region
        $region49: #{tpu_custom_call.1} parent=39 // pred_check
          %p353 = pneg %p92
        $region50: #{tpu_custom_call.1} parent=39 // pred_check_branch
          %355 = sbr.rel (%p353) target = $region52
        $region51: #{tpu_custom_call.1} parent=39 // pred_region
          %p356 = scmp.lt.s32.totalorder %s20, 1
          %s357 = scalar_select %p356, %s20, 1
          %s358 = smul.addr %s357, 8
          %s359 = scalar_lea.vmem %s2, %s358
        $region52: #{tpu_custom_call.1} parent=39 // pred_fallthru
          _
        // Predicated region
        $region53: #{tpu_custom_call.1} parent=39 // pred_check
          %p360 = pneg %p118
        $region54: #{tpu_custom_call.1} parent=39 // pred_check_branch
          %362 = sbr.rel (%p360) target = $region56
        $region55: #{tpu_custom_call.1} parent=39 // pred_region
          %p363 = scmp.lt.s32.totalorder %s20, 1
          %s364 = scalar_select %p363, %s20, 1
          %s365 = smul.addr %s364, 8
          %s366 = scalar_lea.vmem %s3, %s365
        $region56: #{tpu_custom_call.1} parent=39 // pred_fallthru
          _
        // Predicated region
        $region57: #{tpu_custom_call.1} parent=39 // pred_check
          %p367 = pneg %p144
        $region58: #{tpu_custom_call.1} parent=39 // pred_check_branch
          %369 = sbr.rel (%p367) target = $region60
        $region59: #{tpu_custom_call.1} parent=39 // pred_region
          %p370 = scmp.lt.s32.totalorder %s20, 1
          %s371 = scalar_select %p370, %s20, 1
          %s372 = smul.addr %s371, 8
          %s373 = scalar_lea.vmem %s4, %s372
        $region60: #{tpu_custom_call.1} parent=39 // pred_fallthru
          _
      $region40: #{tpu_custom_call.1} parent=5 // pred_fallthru
        _
      %p374 = scmp.le.s32.totalorder 1, %s20
      %p375 = scmp.lt.s32.totalorder %s20, 3
      %p376 = pnand %p374, %p375
      %p377 = pneg %p376
      // Predicated region
      $region61: #{tpu_custom_call.1} parent=5 // pred_check
        _
      $region62: #{tpu_custom_call.1} parent=5 // pred_check_branch
        %379 = sbr.rel (%p376) target = $region64
      $region63: #{tpu_custom_call.1} parent=5 // pred_region
        %s380 = ssub.s32 %s20, 1
        %p381 = scmp.lt.s32.totalorder %s25, 1
        %s382 = scalar_select %p381, %s25, 1
        %s383 = smul.addr %s382, 8
        %s384 = scalar_lea.vmem %s0, %s383
        %p385 = pneg %p46
        %p386 = pneg %p43
        %p387 = scmp.lt.s32.totalorder %s25, 1
        %s388 = scalar_select %p387, %s25, 1
        %s389 = smul.addr %s388, 8
        %s390 = scalar_lea.vmem %s1, %s389
        %p391 = pneg %p72
        %p392 = pneg %p69
        %p393 = scmp.lt.s32.totalorder %s25, 1
        %s394 = scalar_select %p393, %s25, 1
        %s395 = smul.addr %s394, 8
        %s396 = scalar_lea.vmem %s2, %s395
        %p397 = pneg %p98
        %p398 = pneg %p95
        %p399 = scmp.lt.s32.totalorder %s25, 1
        %s400 = scalar_select %p399, %s25, 1
        %s401 = smul.addr %s400, 8
        %s402 = scalar_lea.vmem %s3, %s401
        %p403 = pneg %p124
        %p404 = pneg %p121
        %p405 = scmp.lt.s32.totalorder %s25, 1
        %s406 = scalar_select %p405, %s25, 1
        %s407 = smul.addr %s406, 8
        %s408 = scalar_lea.vmem %s4, %s407
        %p409 = pneg %p150
        %p410 = pneg %p147
        %p411 = pneg %p171
        %p412 = pneg %p168
        %p413 = pneg %p192
        %p414 = pneg %p189
        %p415 = pneg %p213
        %p416 = pneg %p210
        %p417 = pneg %p234
        %p418 = pneg %p231
        %p419 = pneg %p255
        %p420 = pneg %p252
        %p421 = pneg %p276
        %p422 = pneg %p273
        %p423 = pneg %p302
        %p424 = pneg %p299
        %s425 = sand.u32 %s289, 1
        %s426 = scalar_lea.sflag [#allocation3], %s425
        %s427 = sand.u32 %s289, 1
        %s428 = smul.addr %s427, 16
        %s429 = scalar_lea.vmem [#allocation2], %s428
        %p430 = scmp.lt.s32.totalorder %s25, 1
        %s431 = scalar_select %p430, %s25, 1
        %s432 = smul.addr %s431, 8
        %s433 = scalar_lea.vmem %s0, %s432
        %p434 = scmp.lt.s32.totalorder %s25, 1
        %s435 = scalar_select %p434, %s25, 1
        %s436 = smul.addr %s435, 8
        %s437 = scalar_lea.vmem %s1, %s436
        %p438 = scmp.lt.s32.totalorder %s25, 1
        %s439 = scalar_select %p438, %s25, 1
        %s440 = smul.addr %s439, 8
        %s441 = scalar_lea.vmem %s2, %s440
        %p442 = scmp.lt.s32.totalorder %s25, 1
        %s443 = scalar_select %p442, %s25, 1
        %s444 = smul.addr %s443, 8
        %s445 = scalar_lea.vmem %s3, %s444
        %p446 = scmp.lt.s32.totalorder %s25, 1
        %s447 = scalar_select %p446, %s25, 1
        %s448 = smul.addr %s447, 8
        %s449 = scalar_lea.vmem %s4, %s448
        %v451 = vld [vmem:[%s433] sm:$0xff]
        %v452 = vlaneseq
        %v453 = vand.u32 %v452, 127
        %vm454 = vcmp.lt.s32.totalorder %v453, 16
        %v455 = vld [vmem:[%s437] sm:$0xff]
        %v456 = vld [vmem:[%s441] sm:$0xff]
        %v457 = vsel %vm454, %v451, 0.0
        %458 = vadd.xlane.f32.xlu0 %v457
        %v459 = vpop.xlane.xlu0 %458
        %v460 = vmul.f32 %v459, 0.0625
        %v461 = vsub.f32 %v451, %v460
        %v462 = vsel %vm454, %v461, 0.0
        %v463 = vmul.f32 %v462, %v462
        %464 = vadd.xlane.f32.xlu0 %v463
        %v465 = vpop.xlane.xlu0 %464
        %v466 = vmul.f32 %v465, 0.06666667
        %v467 = vrsqrt.pop %v466
        %v468 = vmul.f32 %v466, %v467
        %vm469 = vcmp.eq.f32.partialorder %v466, inf
        %v470 = vsel %vm469, %v466, %v468
        %vm471 = vcmp.eq.f32.partialorder %v466, 0.0
        %v472 = vand.u32 %v466, 2147483648
        %v473 = vsel %vm471, %v472, %v470
        %v474 = vadd.f32 %v473, 1e-08
        %v475 = vrcp.pop %v474
        %v476 = vmul.f32 %v455, %v475
        %v477 = vmul.f32 %v460, %v476
        %v478 = vsub.f32 %v456, %v477
        %480 = vset.pattern.permute.xlu0 0
        %481 = vperm.xlu0 %480, %v476
        %v482 = vpop.permute.xlu0 %481
        %v484 = vmul.f32 %v451, %v482
        %486 = vset.pattern.permute.xlu0 0
        %487 = vperm.xlu0 %486, %v478
        %v488 = vpop.permute.xlu0 %487
        %v490 = vadd.f32 %v484, %v488
        %v491 = vmax.f32 %v490, 0.0
        %v492 = vsel %vm454, %v491, 0.0
        %494 = vrot.lane.b32.xlu0 %v492, 1
        %v495 = vpop.permute.xlu0 %494
        %vm497 = vcmask 7168
        %v498 = vsel %vm497, 0.0, %v495
        %499 = vrot.lane.b32.xlu0 %v492, 127
        %v500 = vpop.permute.xlu0 %499
        %vm502 = vcmask 1039360
        %v503 = vsel %vm502, %v500, 0.0
        %v504 = vld [vmem:[%s5] sm:$0xf]
        %v505 = vpack.c.bf16 %v492, %v498
        %v506 = vpack.c.bf16 %v503, %v503
        %v507 = vld [vmem:[%s6] sm:$0xff]
        %509 = vset.pattern.permute.xlu0 0
        %510 = vperm.xlu0 %509, %v507
        %v511 = vpop.permute.xlu0 %510
        %vm513 = vcmask 195584
        %v515 = vsel %vm513, %v504, 0
        %vm517 = vcmask 1043456
        %v519 = vsel %vm517, %v506, 0
        %521 = vmatprep.subr.bf16.mxu0 0
        %522 = vmatpush1.bf16.msra.mxu0 0
        %523 = vmatprep.subr.bf16.mxu0 0
        %524 = vmatpush1.bf16.msra.mxu0 0
        %525 = vmatprep.subr.bf16.mxu0 0
        %526 = vmatpush1.bf16.msra.mxu0 0
        %527 = vmatprep.subr.bf16.mxu0 0
        %528 = vmatpush1.bf16.msra.mxu0 0
        %529 = vmatprep.subr.bf16.mxu0 0
        %530 = vmatpush1.bf16.msra.mxu0 0
        %531 = vmatprep.subr.bf16.mxu0 0
        %532 = vmatpush1.bf16.msra.mxu0 0
        %533 = vmatprep.subr.bf16.mxu0 0
        %534 = vmatpush1.bf16.msra.mxu0 %v519
        %535 = vmatprep.subr.bf16.mxu0 0
        %536 = vmatpush1.bf16.msra.mxu0 %v505
        %537 = vmatprep.subr.bf16.mxu0 0
        %538 = vmatpush2.bf16.msra.mxu0 0
        %539 = vmatprep.subr.bf16.mxu0 0
        %540 = vmatpush2.bf16.msra.mxu0 0
        %541 = vmatprep.subr.bf16.mxu0 0
        %542 = vmatpush2.bf16.msra.mxu0 0
        %543 = vmatprep.subr.bf16.mxu0 0
        %544 = vmatpush2.bf16.msra.mxu0 0
        %545 = vmatprep.subr.bf16.mxu0 0
        %546 = vmatpush2.bf16.msra.mxu0 0
        %547 = vmatprep.subr.bf16.mxu0 0
        %548 = vmatpush2.bf16.msra.mxu0 0
        %549 = vmatprep.subr.bf16.mxu0 0
        %550 = vmatpush2.bf16.msra.mxu0 0
        %551 = vmatprep.subr.bf16.mxu0 0
        %552 = vmatpush2.bf16.msra.mxu0 0
        %553 = vmatprep.mubr.bf16.mxu0 0
        %554 = vmatmul.mubr.bf16.gmra.mxu0 %v515
        %v555 = vpop.f32.mrf.mxu0
        %v556 = vadd.f32 %v511, %v555
        %v557 = vpop.f32.mrf.mxu0
        %v558 = vpop.f32.mrf.mxu0
        %v559 = vpop.f32.mrf.mxu0
        %560 = vdwg.mxu0
        %v561 = vld [vmem:[%s445] sm:$0xff]
        %v562 = vld [vmem:[%s449] sm:$0xff]
        %v563 = vsel %vm454, %v556, 0.0
        %564 = vadd.xlane.f32.xlu0 %v563
        %v565 = vpop.xlane.xlu0 %564
        %v566 = vmul.f32 %v565, 0.0625
        %v567 = vsub.f32 %v556, %v566
        %v568 = vsel %vm454, %v567, 0.0
        %v569 = vmul.f32 %v568, %v568
        %570 = vadd.xlane.f32.xlu0 %v569
        %v571 = vpop.xlane.xlu0 %570
        %v572 = vmul.f32 %v571, 0.06666667
        %v573 = vrsqrt.pop %v572
        %v574 = vmul.f32 %v572, %v573
        %vm575 = vcmp.eq.f32.partialorder %v572, inf
        %v576 = vsel %vm575, %v572, %v574
        %vm577 = vcmp.eq.f32.partialorder %v572, 0.0
        %v578 = vand.u32 %v572, 2147483648
        %v579 = vsel %vm577, %v578, %v576
        %v580 = vadd.f32 %v579, 1e-08
        %v581 = vrcp.pop %v580
        %v582 = vmul.f32 %v561, %v581
        %v583 = vmul.f32 %v566, %v582
        %v584 = vsub.f32 %v562, %v583
        %586 = vset.pattern.permute.xlu0 0
        %587 = vperm.xlu0 %586, %v582
        %v588 = vpop.permute.xlu0 %587
        %v590 = vmul.f32 %v556, %v588
        %592 = vset.pattern.permute.xlu0 0
        %593 = vperm.xlu0 %592, %v584
        %v594 = vpop.permute.xlu0 %593
        %v596 = vadd.f32 %v590, %v594
        %v597 = vmax.f32 %v596, 0.0
        %v598 = vsel %vm454, %v597, 0.0
        %600 = vrot.lane.b32.xlu0 %v598, 1
        %v601 = vpop.permute.xlu0 %600
        %v603 = vsel %vm497, 0.0, %v601
        %604 = vrot.lane.b32.xlu0 %v598, 127
        %v605 = vpop.permute.xlu0 %604
        %v607 = vsel %vm502, %v605, 0.0
        %v608 = vld [vmem:[%s7] sm:$0xf]
        %v609 = vld [vmem:[%s7 + $0x4] sm:$0xf]
        %v610 = vpack.c.bf16 %v598, %v603
        %v611 = vpack.c.bf16 %v607, %v607
        %v612 = vld [vmem:[%s8] sm:$0xff]
        %v613 = vld [vmem:[%s8 + $0x8] sm:$0xff]
        %615 = vset.pattern.permute.xlu0 0
        %616 = vperm.xlu0 %615, %v612
        %v617 = vpop.permute.xlu0 %616
        %620 = vset.pattern.permute.xlu0 0
        %621 = vperm.xlu0 %620, %v613
        %v622 = vpop.permute.xlu0 %621
        %v626 = vunpack.c.l.b16 %v608
        %v627 = vunpack.c.l.b16 %v609
        %v628 = vpack.c.b16 %v627, %v626
        %v630 = vsel %vm513, %v628, 0
        %v633 = vsel %vm517, %v611, 0
        %635 = vmatprep.subr.bf16.mxu0 0
        %636 = vmatpush1.bf16.msra.mxu0 0
        %637 = vmatprep.subr.bf16.mxu0 0
        %638 = vmatpush1.bf16.msra.mxu0 0
        %639 = vmatprep.subr.bf16.mxu0 0
        %640 = vmatpush1.bf16.msra.mxu0 0
        %641 = vmatprep.subr.bf16.mxu0 0
        %642 = vmatpush1.bf16.msra.mxu0 0
        %643 = vmatprep.subr.bf16.mxu0 0
        %644 = vmatpush1.bf16.msra.mxu0 0
        %645 = vmatprep.subr.bf16.mxu0 0
        %646 = vmatpush1.bf16.msra.mxu0 0
        %647 = vmatprep.subr.bf16.mxu0 0
        %648 = vmatpush1.bf16.msra.mxu0 %v633
        %649 = vmatprep.subr.bf16.mxu0 0
        %650 = vmatpush1.bf16.msra.mxu0 %v610
        %651 = vmatprep.subr.bf16.mxu0 0
        %652 = vmatpush2.bf16.msra.mxu0 0
        %653 = vmatprep.subr.bf16.mxu0 0
        %654 = vmatpush2.bf16.msra.mxu0 0
        %655 = vmatprep.subr.bf16.mxu0 0
        %656 = vmatpush2.bf16.msra.mxu0 0
        %657 = vmatprep.subr.bf16.mxu0 0
        %658 = vmatpush2.bf16.msra.mxu0 0
        %659 = vmatprep.subr.bf16.mxu0 0
        %660 = vmatpush2.bf16.msra.mxu0 0
        %661 = vmatprep.subr.bf16.mxu0 0
        %662 = vmatpush2.bf16.msra.mxu0 0
        %663 = vmatprep.subr.bf16.mxu0 0
        %664 = vmatpush2.bf16.msra.mxu0 0
        %665 = vmatprep.subr.bf16.mxu0 0
        %666 = vmatpush2.bf16.msra.mxu0 0
        %667 = vmatprep.mubr.bf16.mxu0 0
        %668 = vmatmul.mubr.bf16.gmra.mxu0 %v630
        %v669 = vpop.f32.mrf.mxu0
        %v670 = vadd.f32 %v617, %v669
        %v671 = vpop.f32.mrf.mxu0
        %v672 = vpop.f32.mrf.mxu0
        %v673 = vadd.f32 %v622, %v672
        %v674 = vpop.f32.mrf.mxu0
        %675 = vdwg.mxu0
        %v676 = vld [vmem:[%s9] sm:$0xf]
        %v677 = vld [vmem:[%s9 + $0x4] sm:$0xf]
        %v678 = vpack.c.bf16 %v451, %v451
        %v679 = vld [vmem:[%s10] sm:$0xff]
        %v680 = vld [vmem:[%s10 + $0x8] sm:$0xff]
        %682 = vset.pattern.permute.xlu0 0
        %683 = vperm.xlu0 %682, %v679
        %v684 = vpop.permute.xlu0 %683
        %687 = vset.pattern.permute.xlu0 0
        %688 = vperm.xlu0 %687, %v680
        %v689 = vpop.permute.xlu0 %688
        %v693 = vunpack.c.l.b16 %v676
        %v694 = vunpack.c.l.b16 %v677
        %v695 = vpack.c.b16 %v694, %v693
        %vm696 = vcmask 64512
        %v698 = vsel %vm696, %v695, 0
        %v701 = vsel %vm517, %v678, 0
        %703 = vmatprep.subr.bf16.mxu0 0
        %704 = vmatpush1.bf16.msra.mxu0 0
        %705 = vmatprep.subr.bf16.mxu0 0
        %706 = vmatpush1.bf16.msra.mxu0 0
        %707 = vmatprep.subr.bf16.mxu0 0
        %708 = vmatpush1.bf16.msra.mxu0 0
        %709 = vmatprep.subr.bf16.mxu0 0
        %710 = vmatpush1.bf16.msra.mxu0 0
        %711 = vmatprep.subr.bf16.mxu0 0
        %712 = vmatpush1.bf16.msra.mxu0 0
        %713 = vmatprep.subr.bf16.mxu0 0
        %714 = vmatpush1.bf16.msra.mxu0 0
        %715 = vmatprep.subr.bf16.mxu0 0
        %716 = vmatpush1.bf16.msra.mxu0 0
        %717 = vmatprep.subr.bf16.mxu0 0
        %718 = vmatpush1.bf16.msra.mxu0 %v701
        %719 = vmatprep.subr.bf16.mxu0 0
        %720 = vmatpush2.bf16.msra.mxu0 0
        %721 = vmatprep.subr.bf16.mxu0 0
        %722 = vmatpush2.bf16.msra.mxu0 0
        %723 = vmatprep.subr.bf16.mxu0 0
        %724 = vmatpush2.bf16.msra.mxu0 0
        %725 = vmatprep.subr.bf16.mxu0 0
        %726 = vmatpush2.bf16.msra.mxu0 0
        %727 = vmatprep.subr.bf16.mxu0 0
        %728 = vmatpush2.bf16.msra.mxu0 0
        %729 = vmatprep.subr.bf16.mxu0 0
        %730 = vmatpush2.bf16.msra.mxu0 0
        %731 = vmatprep.subr.bf16.mxu0 0
        %732 = vmatpush2.bf16.msra.mxu0 0
        %733 = vmatprep.subr.bf16.mxu0 0
        %734 = vmatpush2.bf16.msra.mxu0 0
        %735 = vmatprep.mubr.bf16.mxu0 0
        %736 = vmatmul.mubr.bf16.gmra.mxu0 %v698
        %v737 = vpop.f32.mrf.mxu0
        %v738 = vadd.f32 %v684, %v737
        %v739 = vpop.f32.mrf.mxu0
        %v740 = vpop.f32.mrf.mxu0
        %v741 = vadd.f32 %v689, %v740
        %v742 = vpop.f32.mrf.mxu0
        %743 = vdwg.mxu0
        %v744 = vadd.f32 %v670, %v738
        %v745 = vadd.f32 %v673, %v741
        %746 = vst [vmem:[%s429] sm:$0xff] %v744
        %747 = vst [vmem:[%s429 + $0x8] sm:$0xff] %v745
        %s748 = sand.u32 %s289, 1
        %s749 = scalar_lea.sflag [#allocation3], %s748
        %s750 = sand.u32 %s289, 1
        %s751 = smul.addr %s750, 16
        %s752 = scalar_lea.vmem [#allocation2], %s751
        // Predicated region
        $region65: #{tpu_custom_call.1} parent=63 // pred_check
          %p753 = pneg %p299
        $region66: #{tpu_custom_call.1} parent=63 // pred_check_branch
          %755 = sbr.rel (%p753) target = $region68
        $region67: #{tpu_custom_call.1} parent=63 // pred_region
          %s757 = ssub.s32 256, 256
          %758 = vsyncadd %s749, %s757
          %s759 = smul.addr %s25, 2
          %s760 = smul.addr %s759, 128
          %s761 = scalar_lea.hbm %s11, %s760
          %s762 = sshll.u32 %s752, 4
          %s763 = int_to_ptr.vmem [resolvable:$true] %s762
          %768 = dma.vmem_to_hbm [thread:$0]  %s763, 256, %s761, %s749, 128, 128, 8
        $region68: #{tpu_custom_call.1} parent=63 // pred_fallthru
          _
      $region64: #{tpu_custom_call.1} parent=5 // pred_fallthru
        _
      %p769 = scmp.le.s32.totalorder 2, %s20
      // Predicated region
      $region69: #{tpu_custom_call.1} parent=5 // pred_check
        %p770 = pneg %p769
      $region70: #{tpu_custom_call.1} parent=5 // pred_check_branch
        %772 = sbr.rel (%p770) target = $region72
      $region71: #{tpu_custom_call.1} parent=5 // pred_region
        %s773 = ssub.s32 %s20, 2
        // Predicated region
        $region73: #{tpu_custom_call.1} parent=71 // pred_check
          %p774 = pneg %p305
        $region74: #{tpu_custom_call.1} parent=71 // pred_check_branch
          %776 = sbr.rel (%p774) target = $region76
        $region75: #{tpu_custom_call.1} parent=71 // pred_region
          %s777 = sand.u32 %s290, 1
          %s778 = scalar_lea.sflag [#allocation3], %s777
          %s779 = sand.u32 %s290, 1
          %s780 = smul.addr %s779, 16
          %s781 = scalar_lea.vmem [#allocation2], %s780
          %782 = dma.done %s778, 256
        $region76: #{tpu_custom_call.1} parent=71 // pred_fallthru
          _
      $region72: #{tpu_custom_call.1} parent=5 // pred_fallthru
        _
    $region6: #{tpu_custom_call.1} parent=1 // loop_footer
      %s24 = sadd.s32 1, %s20
    $region7: #{tpu_custom_call.1} parent=1 // loop_footer_branch
      %19 = sbr.rel target = $region3
    $region8: #{tpu_custom_call.1} parent=1 // loop_exit
      _
    %783 = vsyncpa [#allocation3], 1
    %s784 = scalar_lea.sflag [#allocation3], 1
    %785 = vsyncpa %s784, 1

</llo_original>
